<compile_context>
chip_gen: v5e
topology: v5e:2x2
jax: 0.10.0
libtpu: 0.0.40
codegen_flags: <defaults>
</compile_context>

<pallas_src>
import functools

import jax
import jax.numpy as jnp
from jax import lax
from jax.experimental import pallas as pl
from jax.experimental.pallas import tpu as pltpu

EPS = 1e-10
_SMALL_N_FALLBACK = 1024   # below this, plain fused JAX beats a pallas_call
_APPROX_RECIP = True       # EUP vrcp without the Newton refine (VPU relief)


def _siou_tile_kernel(b1_ref, b2_ref, o_ref, *, n_valid, need_mask):
    """One (4, R, 128) tile of box pairs -> (8, 128) partial loss sum."""
    # dense (R, 128) planes; indexing the leading (non-tiled) axis is cheap
    b1_cx, b1_cy, b1_w, b1_h = b1_ref[0], b1_ref[1], b1_ref[2], b1_ref[3]
    b2_cx, b2_cy, b2_w, b2_h = b2_ref[0], b2_ref[1], b2_ref[2], b2_ref[3]

    half_w1, half_h1 = b1_w * 0.5, b1_h * 0.5
    half_w2, half_h2 = b2_w * 0.5, b2_h * 0.5
    b1_x1, b1_x2 = b1_cx - half_w1, b1_cx + half_w1
    b1_y1, b1_y2 = b1_cy - half_h1, b1_cy + half_h1
    b2_x1, b2_x2 = b2_cx - half_w2, b2_cx + half_w2
    b2_y1, b2_y2 = b2_cy - half_h2, b2_cy + half_h2

    inter_w = jnp.minimum(b1_x2, b2_x2) - jnp.maximum(b1_x1, b2_x1)
    inter_h = jnp.minimum(b1_y2, b2_y2) - jnp.maximum(b1_y1, b2_y1)
    inter = jnp.maximum(inter_w, 0.0) * jnp.maximum(inter_h, 0.0)

    # algebraic: x2 - x1 == w, y2 - y1 == h (skip the corner round-trip)
    w1, h1 = b1_w, b1_h + EPS
    w2, h2 = b2_w, b2_h + EPS
    union = w1 * h1 + w2 * h2 - inter + EPS
    iou = inter * pl.reciprocal(union, approx=_APPROX_RECIP)

    cw = jnp.maximum(b1_x2, b2_x2) - jnp.minimum(b1_x1, b2_x1)
    ch = jnp.maximum(b1_y2, b2_y2) - jnp.minimum(b1_y1, b2_y1)

    # algebraic: (b2_x1 + b2_x2 - b1_x1 - b1_x2) * 0.5 == b2_cx - b1_cx
    s_cw = b2_cx - b1_cx
    s_ch = b2_cy - b1_cy
    # 1 / (sqrt(d2) + EPS)  ~=  rsqrt(d2 + EPS^2): one EUP op, no divides
    inv_sigma = lax.rsqrt(s_cw * s_cw + s_ch * s_ch + EPS * EPS)
    sin_alpha_1 = jnp.abs(s_cw) * inv_sigma
    sin_alpha_2 = jnp.abs(s_ch) * inv_sigma
    threshold = 0.7071067811865476  # sqrt(2) / 2
    sin_alpha = jnp.where(sin_alpha_1 > threshold, sin_alpha_2, sin_alpha_1)
    # sin(2 * arcsin(s)) == 2 * s * sqrt(1 - s^2)  (exact identity)
    angle_cost = 2.0 * sin_alpha * jnp.sqrt(
        jnp.maximum(1.0 - sin_alpha * sin_alpha, 0.0))

    gamma = angle_cost - 2.0
    rho_x = jnp.square(s_cw * pl.reciprocal(cw + EPS, approx=_APPROX_RECIP))
    rho_y = jnp.square(s_ch * pl.reciprocal(ch + EPS, approx=_APPROX_RECIP))
    distance_cost = 2.0 - jnp.exp(gamma * rho_x) - jnp.exp(gamma * rho_y)

    omiga_w = jnp.abs(w1 - w2) * pl.reciprocal(jnp.maximum(w1, w2),
                                               approx=_APPROX_RECIP)
    omiga_h = jnp.abs(h1 - h2) * pl.reciprocal(jnp.maximum(h1, h2),
                                               approx=_APPROX_RECIP)
    ew = 1.0 - jnp.exp(-omiga_w)
    eh = 1.0 - jnp.exp(-omiga_h)
    shape_cost = jnp.square(jnp.square(ew)) + jnp.square(jnp.square(eh))

    loss = iou - 0.5 * (distance_cost + shape_cost) + EPS   # (R, 128)

    if need_mask:
        rows = loss.shape[0]
        start = pl.program_id(0) * (rows * 128)
        gidx = (start
                + lax.broadcasted_iota(jnp.int32, loss.shape, 0) * 128
                + lax.broadcasted_iota(jnp.int32, loss.shape, 1))
        loss = jnp.where(gidx < n_valid, loss, 0.0)

    # fold the sublane-major axis in vreg-sized groups -> lane-dense (8, 128)
    # partial (pure vreg-wise adds on the VPU; no cross-lane reduce in-kernel)
    partial = loss.reshape(loss.shape[0] // 8, 8, 128).sum(axis=0)
    o_ref[0] = partial


def _siou_loss_pallas(box1, box2, *, tile_rows=512):
    n = box1.shape[1]
    rows_needed = pl.cdiv(pl.cdiv(n, 128), 8) * 8      # multiple of 8 sublanes
    tile_rows = max(8, (tile_rows // 8) * 8)
    if rows_needed <= tile_rows:
        tile_rows, grid = rows_needed, 1
    else:
        grid = pl.cdiv(rows_needed, tile_rows)
    rows_total = grid * tile_rows
    n_pad = rows_total * 128

    def to_planes(b):
        # pad with 1.0 (not 0.0) so padded boxes have w=h=1 and every
        # intermediate stays finite; padded lanes are masked out of the sum.
        b = jnp.pad(b, ((0, 0), (0, n_pad - n)), constant_values=1.0)
        return b.reshape(4, rows_total, 128)

    kernel = functools.partial(_siou_tile_kernel, n_valid=n,
                               need_mask=(n_pad != n))

    partials = pl.pallas_call(
        kernel,
        out_shape=jax.ShapeDtypeStruct((grid, 8, 128), jnp.float32),
        grid_spec=pltpu.PrefetchScalarGridSpec(
            num_scalar_prefetch=0,
            grid=(grid,),
            in_specs=[
                pl.BlockSpec((4, tile_rows, 128), lambda i: (0, i, 0)),
                pl.BlockSpec((4, tile_rows, 128), lambda i: (0, i, 0)),
            ],
            out_specs=pl.BlockSpec((1, 8, 128), lambda i: (i, 0, 0)),
        ),
        compiler_params=pltpu.CompilerParams(
            dimension_semantics=("parallel",)),
    )(to_planes(box1), to_planes(box2))

    # per-tile partial sums -> abs(mean) in plain JAX (keeps the grid parallel
    # across TensorCores and avoids a single long serial f32 accumulator)
    return jnp.abs(jnp.sum(partials) / n)


def _siou_reference(box1, box2):
    """Pure-JAX mirror of the PyTorch forward (also the small-N fast path)."""
    b1_x1, b1_x2 = box1[0] - box1[2] / 2, box1[0] + box1[2] / 2
    b1_y1, b1_y2 = box1[1] - box1[3] / 2, box1[1] + box1[3] / 2
    b2_x1, b2_x2 = box2[0] - box2[2] / 2, box2[0] + box2[2] / 2
    b2_y1, b2_y2 = box2[1] - box2[3] / 2, box2[1] + box2[3] / 2
    inter = jnp.clip(jnp.minimum(b1_x2, b2_x2) - jnp.maximum(b1_x1, b2_x1), 0, None) * \
            jnp.clip(jnp.minimum(b1_y2, b2_y2) - jnp.maximum(b1_y1, b2_y1), 0, None)
    w1, h1 = b1_x2 - b1_x1, b1_y2 - b1_y1 + EPS
    w2, h2 = b2_x2 - b2_x1, b2_y2 - b2_y1 + EPS
    union = w1 * h1 + w2 * h2 - inter + EPS
    iou = inter / union
    cw = jnp.maximum(b1_x2, b2_x2) - jnp.minimum(b1_x1, b2_x1)
    ch = jnp.maximum(b1_y2, b2_y2) - jnp.minimum(b1_y1, b2_y1)
    s_cw = (b2_x1 + b2_x2 - b1_x1 - b1_x2) * 0.5
    s_ch = (b2_y1 + b2_y2 - b1_y1 - b1_y2) * 0.5
    sigma = jnp.sqrt(s_cw ** 2 + s_ch ** 2) + EPS
    sin_alpha_1 = jnp.abs(s_cw) / sigma
    sin_alpha_2 = jnp.abs(s_ch) / sigma
    threshold = 2 ** 0.5 / 2
    sin_alpha = jnp.where(sin_alpha_1 > threshold, sin_alpha_2, sin_alpha_1)
    angle_cost = jnp.sin(jnp.arcsin(sin_alpha) * 2)
    rho_x = (s_cw / (cw + EPS)) ** 2
    rho_y = (s_ch / (ch + EPS)) ** 2
    gamma = angle_cost - 2
    distance_cost = 2 - jnp.exp(gamma * rho_x) - jnp.exp(gamma * rho_y)
    omiga_w = jnp.abs(w1 - w2) / jnp.maximum(w1, w2)
    omiga_h = jnp.abs(h1 - h2) / jnp.maximum(h1, h2)
    shape_cost = (1 - jnp.exp(-omiga_w)) ** 4 + (1 - jnp.exp(-omiga_h)) ** 4
    loss = iou - 0.5 * (distance_cost + shape_cost) + EPS
    return jnp.abs(loss.mean())


def siou_loss(box1, box2, *, tile_rows=512):
    """box1, box2: (4, N) f32 coordinate-major. Returns scalar f32 SIoU loss."""
    assert box1.shape == box2.shape and box1.shape[0] == 4
    box1 = box1.astype(jnp.float32)
    box2 = box2.astype(jnp.float32)
    n = box1.shape[1]
    if n < _SMALL_N_FALLBACK:
        # Pallas launch/DMA overhead dominates at tiny N; fused XLA is faster.
        return _siou_reference(box1, box2)
    return _siou_loss_pallas(box1, box2, tile_rows=tile_rows)


if __name__ == "__main__":
    key = jax.random.PRNGKey(0)
    k1, k2, k3, k4 = jax.random.split(key, 4)
    # N deliberately NOT a multiple of 128 -> exercises the pad+mask path,
    # and >= _SMALL_N_FALLBACK -> exercises the Pallas path.
    N = 2000

    # boxes: centers in [0, 10), positive widths/heights in (0.5, 5]
    c1 = jax.random.uniform(k1, (2, N), jnp.float32, 0.0, 10.0)
    wh1 = jax.random.uniform(k2, (2, N), jnp.float32, 0.5, 5.0)
    c2 = jax.random.uniform(k3, (2, N), jnp.float32, 0.0, 10.0)
    wh2 = jax.random.uniform(k4, (2, N), jnp.float32, 0.5, 5.0)
    box1 = jnp.concatenate([c1, wh1], axis=0)  # (4, N)
    box2 = jnp.concatenate([c2, wh2], axis=0)  # (4, N)

    out = siou_loss(box1, box2)                # Pallas kernel path
    jax.block_until_ready(out)

    ref = _siou_reference(box1, box2)
    # Tolerance is looser than 1e-5 because the kernel uses approx EUP
    # reciprocals / rsqrt and the exact sin(2*arcsin) identity; expected
    # deviation on the mean is O(1e-4) or less.
    assert jnp.allclose(out, ref, atol=5e-3, rtol=5e-3), (out, ref)

    print("KERNEL_OK")
</pallas_src>

<mosaic_0001>
module attributes {stable_mosaic.version = 11 : i64} {
  func.func @_siou_tile_kernel(%arg0: i32, %arg1: memref<4x16x128xf32, #tpu.memory_space<vmem>>, %arg2: memref<4x16x128xf32, #tpu.memory_space<vmem>>, %arg3: memref<1x8x128xf32, #tpu.memory_space<vmem>>) attributes {dimension_semantics = [#tpu.dimension_semantics<parallel>], iteration_bounds = array<i64: 1>, scalar_prefetch = 0 : i64, scratch_operands = 0 : i64, tpu.core_type = #tpu.core_type<tc>, window_params = [{transform_indices = @transform_0, window_bounds = array<i64: 4, 16, 128>}, {transform_indices = @transform_1, window_bounds = array<i64: 4, 16, 128>}, {transform_indices = @transform_2, window_bounds = array<i64: 1, 8, 128>}]} {
    %c0 = arith.constant 0 : index
    %c0_0 = arith.constant 0 : index
    %c0_1 = arith.constant 0 : index
    %0 = vector.load %arg1[%c0, %c0_0, %c0_1] : memref<4x16x128xf32, #tpu.memory_space<vmem>>, vector<1x16x128xf32>
    %1 = vector.shape_cast %0 : vector<1x16x128xf32> to vector<16x128xf32>
    %c1 = arith.constant 1 : index
    %c0_2 = arith.constant 0 : index
    %c0_3 = arith.constant 0 : index
    %2 = vector.load %arg1[%c1, %c0_2, %c0_3] : memref<4x16x128xf32, #tpu.memory_space<vmem>>, vector<1x16x128xf32>
    %3 = vector.shape_cast %2 : vector<1x16x128xf32> to vector<16x128xf32>
    %c2 = arith.constant 2 : index
    %c0_4 = arith.constant 0 : index
    %c0_5 = arith.constant 0 : index
    %4 = vector.load %arg1[%c2, %c0_4, %c0_5] : memref<4x16x128xf32, #tpu.memory_space<vmem>>, vector<1x16x128xf32>
    %5 = vector.shape_cast %4 : vector<1x16x128xf32> to vector<16x128xf32>
    %c3 = arith.constant 3 : index
    %c0_6 = arith.constant 0 : index
    %c0_7 = arith.constant 0 : index
    %6 = vector.load %arg1[%c3, %c0_6, %c0_7] : memref<4x16x128xf32, #tpu.memory_space<vmem>>, vector<1x16x128xf32>
    %7 = vector.shape_cast %6 : vector<1x16x128xf32> to vector<16x128xf32>
    %c0_8 = arith.constant 0 : index
    %c0_9 = arith.constant 0 : index
    %c0_10 = arith.constant 0 : index
    %8 = vector.load %arg2[%c0_8, %c0_9, %c0_10] : memref<4x16x128xf32, #tpu.memory_space<vmem>>, vector<1x16x128xf32>
    %9 = vector.shape_cast %8 : vector<1x16x128xf32> to vector<16x128xf32>
    %c1_11 = arith.constant 1 : index
    %c0_12 = arith.constant 0 : index
    %c0_13 = arith.constant 0 : index
    %10 = vector.load %arg2[%c1_11, %c0_12, %c0_13] : memref<4x16x128xf32, #tpu.memory_space<vmem>>, vector<1x16x128xf32>
    %11 = vector.shape_cast %10 : vector<1x16x128xf32> to vector<16x128xf32>
    %c2_14 = arith.constant 2 : index
    %c0_15 = arith.constant 0 : index
    %c0_16 = arith.constant 0 : index
    %12 = vector.load %arg2[%c2_14, %c0_15, %c0_16] : memref<4x16x128xf32, #tpu.memory_space<vmem>>, vector<1x16x128xf32>
    %13 = vector.shape_cast %12 : vector<1x16x128xf32> to vector<16x128xf32>
    %c3_17 = arith.constant 3 : index
    %c0_18 = arith.constant 0 : index
    %c0_19 = arith.constant 0 : index
    %14 = vector.load %arg2[%c3_17, %c0_18, %c0_19] : memref<4x16x128xf32, #tpu.memory_space<vmem>>, vector<1x16x128xf32>
    %15 = vector.shape_cast %14 : vector<1x16x128xf32> to vector<16x128xf32>
    %cst = arith.constant 5.000000e-01 : f32
    %16 = vector.broadcast %cst : f32 to vector<16x128xf32>
    %17 = arith.mulf %5, %16 : vector<16x128xf32>
    %cst_20 = arith.constant 5.000000e-01 : f32
    %18 = vector.broadcast %cst_20 : f32 to vector<16x128xf32>
    %19 = arith.mulf %7, %18 : vector<16x128xf32>
    %cst_21 = arith.constant 5.000000e-01 : f32
    %20 = vector.broadcast %cst_21 : f32 to vector<16x128xf32>
    %21 = arith.mulf %13, %20 : vector<16x128xf32>
    %cst_22 = arith.constant 5.000000e-01 : f32
    %22 = vector.broadcast %cst_22 : f32 to vector<16x128xf32>
    %23 = arith.mulf %15, %22 : vector<16x128xf32>
    %24 = arith.subf %1, %17 : vector<16x128xf32>
    %25 = arith.addf %1, %17 : vector<16x128xf32>
    %26 = arith.subf %3, %19 : vector<16x128xf32>
    %27 = arith.addf %3, %19 : vector<16x128xf32>
    %28 = arith.subf %9, %21 : vector<16x128xf32>
    %29 = arith.addf %9, %21 : vector<16x128xf32>
    %30 = arith.subf %11, %23 : vector<16x128xf32>
    %31 = arith.addf %11, %23 : vector<16x128xf32>
    %32 = arith.minimumf %25, %29 : vector<16x128xf32>
    %33 = arith.maximumf %24, %28 : vector<16x128xf32>
    %34 = arith.subf %32, %33 : vector<16x128xf32>
    %35 = arith.minimumf %27, %31 : vector<16x128xf32>
    %36 = arith.maximumf %26, %30 : vector<16x128xf32>
    %37 = arith.subf %35, %36 : vector<16x128xf32>
    %cst_23 = arith.constant 0.000000e+00 : f32
    %38 = vector.broadcast %cst_23 : f32 to vector<16x128xf32>
    %39 = arith.maximumf %34, %38 : vector<16x128xf32>
    %cst_24 = arith.constant 0.000000e+00 : f32
    %40 = vector.broadcast %cst_24 : f32 to vector<16x128xf32>
    %41 = arith.maximumf %37, %40 : vector<16x128xf32>
    %42 = arith.mulf %39, %41 : vector<16x128xf32>
    %cst_25 = arith.constant 1.000000e-10 : f32
    %43 = vector.broadcast %cst_25 : f32 to vector<16x128xf32>
    %44 = arith.addf %7, %43 : vector<16x128xf32>
    %cst_26 = arith.constant 1.000000e-10 : f32
    %45 = vector.broadcast %cst_26 : f32 to vector<16x128xf32>
    %46 = arith.addf %15, %45 : vector<16x128xf32>
    %47 = arith.mulf %5, %44 : vector<16x128xf32>
    %48 = arith.mulf %13, %46 : vector<16x128xf32>
    %49 = arith.addf %47, %48 : vector<16x128xf32>
    %50 = arith.subf %49, %42 : vector<16x128xf32>
    %cst_27 = arith.constant 1.000000e-10 : f32
    %51 = vector.broadcast %cst_27 : f32 to vector<16x128xf32>
    %52 = arith.addf %50, %51 : vector<16x128xf32>
    %53 = tpu.reciprocal %52 {approx = true} : vector<16x128xf32> -> vector<16x128xf32>
    %54 = arith.mulf %42, %53 : vector<16x128xf32>
    %55 = arith.maximumf %25, %29 : vector<16x128xf32>
    %56 = arith.minimumf %24, %28 : vector<16x128xf32>
    %57 = arith.subf %55, %56 : vector<16x128xf32>
    %58 = arith.maximumf %27, %31 : vector<16x128xf32>
    %59 = arith.minimumf %26, %30 : vector<16x128xf32>
    %60 = arith.subf %58, %59 : vector<16x128xf32>
    %61 = arith.subf %9, %1 : vector<16x128xf32>
    %62 = arith.subf %11, %3 : vector<16x128xf32>
    %63 = arith.mulf %61, %61 : vector<16x128xf32>
    %64 = arith.mulf %62, %62 : vector<16x128xf32>
    %65 = arith.addf %63, %64 : vector<16x128xf32>
    %cst_28 = arith.constant 9.99999968E-21 : f32
    %66 = vector.broadcast %cst_28 : f32 to vector<16x128xf32>
    %67 = arith.addf %65, %66 : vector<16x128xf32>
    %68 = math.rsqrt %67 : vector<16x128xf32>
    %69 = math.absf %61 : vector<16x128xf32>
    %70 = arith.mulf %69, %68 : vector<16x128xf32>
    %71 = math.absf %62 : vector<16x128xf32>
    %72 = arith.mulf %71, %68 : vector<16x128xf32>
    %cst_29 = arith.constant 0.707106769 : f32
    %73 = vector.broadcast %cst_29 : f32 to vector<16x128xf32>
    %74 = arith.cmpf ogt, %70, %73 : vector<16x128xf32>
    %75 = arith.select %74, %72, %70 : vector<16x128xi1>, vector<16x128xf32>
    %cst_30 = arith.constant 2.000000e+00 : f32
    %76 = vector.broadcast %cst_30 : f32 to vector<16x128xf32>
    %77 = arith.mulf %76, %75 : vector<16x128xf32>
    %78 = arith.mulf %75, %75 : vector<16x128xf32>
    %cst_31 = arith.constant 1.000000e+00 : f32
    %79 = vector.broadcast %cst_31 : f32 to vector<16x128xf32>
    %80 = arith.subf %79, %78 : vector<16x128xf32>
    %cst_32 = arith.constant 0.000000e+00 : f32
    %81 = vector.broadcast %cst_32 : f32 to vector<16x128xf32>
    %82 = arith.maximumf %80, %81 : vector<16x128xf32>
    %83 = math.sqrt %82 : vector<16x128xf32>
    %84 = arith.mulf %77, %83 : vector<16x128xf32>
    %cst_33 = arith.constant 2.000000e+00 : f32
    %85 = vector.broadcast %cst_33 : f32 to vector<16x128xf32>
    %86 = arith.subf %84, %85 : vector<16x128xf32>
    %cst_34 = arith.constant 1.000000e-10 : f32
    %87 = vector.broadcast %cst_34 : f32 to vector<16x128xf32>
    %88 = arith.addf %57, %87 : vector<16x128xf32>
    %89 = tpu.reciprocal %88 {approx = true} : vector<16x128xf32> -> vector<16x128xf32>
    %90 = arith.mulf %61, %89 : vector<16x128xf32>
    %91 = arith.mulf %90, %90 : vector<16x128xf32>
    %cst_35 = arith.constant 1.000000e-10 : f32
    %92 = vector.broadcast %cst_35 : f32 to vector<16x128xf32>
    %93 = arith.addf %60, %92 : vector<16x128xf32>
    %94 = tpu.reciprocal %93 {approx = true} : vector<16x128xf32> -> vector<16x128xf32>
    %95 = arith.mulf %62, %94 : vector<16x128xf32>
    %96 = arith.mulf %95, %95 : vector<16x128xf32>
    %97 = arith.mulf %86, %91 : vector<16x128xf32>
    %98 = math.exp %97 : vector<16x128xf32>
    %cst_36 = arith.constant 2.000000e+00 : f32
    %99 = vector.broadcast %cst_36 : f32 to vector<16x128xf32>
    %100 = arith.subf %99, %98 : vector<16x128xf32>
    %101 = arith.mulf %86, %96 : vector<16x128xf32>
    %102 = math.exp %101 : vector<16x128xf32>
    %103 = arith.subf %100, %102 : vector<16x128xf32>
    %104 = arith.subf %5, %13 : vector<16x128xf32>
    %105 = math.absf %104 : vector<16x128xf32>
    %106 = arith.maximumf %5, %13 : vector<16x128xf32>
    %107 = tpu.reciprocal %106 {approx = true} : vector<16x128xf32> -> vector<16x128xf32>
    %108 = arith.mulf %105, %107 : vector<16x128xf32>
    %109 = arith.subf %44, %46 : vector<16x128xf32>
    %110 = math.absf %109 : vector<16x128xf32>
    %111 = arith.maximumf %44, %46 : vector<16x128xf32>
    %112 = tpu.reciprocal %111 {approx = true} : vector<16x128xf32> -> vector<16x128xf32>
    %113 = arith.mulf %110, %112 : vector<16x128xf32>
    %cst_37 = arith.constant 0.000000e+00 : f32
    %114 = vector.broadcast %cst_37 : f32 to vector<16x128xf32>
    %115 = arith.subf %114, %108 : vector<16x128xf32>
    %116 = math.exp %115 : vector<16x128xf32>
    %cst_38 = arith.constant 1.000000e+00 : f32
    %117 = vector.broadcast %cst_38 : f32 to vector<16x128xf32>
    %118 = arith.subf %117, %116 : vector<16x128xf32>
    %cst_39 = arith.constant 0.000000e+00 : f32
    %119 = vector.broadcast %cst_39 : f32 to vector<16x128xf32>
    %120 = arith.subf %119, %113 : vector<16x128xf32>
    %121 = math.exp %120 : vector<16x128xf32>
    %cst_40 = arith.constant 1.000000e+00 : f32
    %122 = vector.broadcast %cst_40 : f32 to vector<16x128xf32>
    %123 = arith.subf %122, %121 : vector<16x128xf32>
    %124 = arith.mulf %118, %118 : vector<16x128xf32>
    %125 = arith.mulf %124, %124 : vector<16x128xf32>
    %126 = arith.mulf %123, %123 : vector<16x128xf32>
    %127 = arith.mulf %126, %126 : vector<16x128xf32>
    %128 = arith.addf %125, %127 : vector<16x128xf32>
    %129 = arith.addf %103, %128 : vector<16x128xf32>
    %cst_41 = arith.constant 5.000000e-01 : f32
    %130 = vector.broadcast %cst_41 : f32 to vector<16x128xf32>
    %131 = arith.mulf %130, %129 : vector<16x128xf32>
    %132 = arith.subf %54, %131 : vector<16x128xf32>
    %cst_42 = arith.constant 1.000000e-10 : f32
    %133 = vector.broadcast %cst_42 : f32 to vector<16x128xf32>
    %134 = arith.addf %132, %133 : vector<16x128xf32>
    %c2048_i32 = arith.constant 2048 : i32
    %135 = arith.muli %arg0, %c2048_i32 : i32
    %136 = tpu.iota {dimensions = array<i32: 0>} : vector<16x128xi32>
    %c128_i32 = arith.constant 128 : i32
    %137 = vector.broadcast %c128_i32 : i32 to vector<16x128xi32>
    %138 = arith.muli %136, %137 : vector<16x128xi32>
    %139 = vector.broadcast %135 : i32 to vector<16x128xi32>
    %140 = arith.addi %139, %138 : vector<16x128xi32>
    %141 = tpu.iota {dimensions = array<i32: 1>} : vector<16x128xi32>
    %142 = arith.addi %140, %141 : vector<16x128xi32>
    %c2000_i32 = arith.constant 2000 : i32
    %143 = vector.broadcast %c2000_i32 : i32 to vector<16x128xi32>
    %144 = arith.cmpi slt, %142, %143 : vector<16x128xi32>
    %cst_43 = arith.constant 0.000000e+00 : f32
    %145 = vector.broadcast %cst_43 : f32 to vector<16x128xf32>
    %146 = arith.select %144, %134, %145 : vector<16x128xi1>, vector<16x128xf32>
    %147 = vector.shape_cast %146 : vector<16x128xf32> to vector<2x8x128xf32>
    %cst_44 = arith.constant dense<0.000000e+00> : vector<8x128xf32>
    %148 = vector.multi_reduction <add>, %147, %cst_44 [0] : vector<2x8x128xf32> to vector<8x128xf32>
    %c0_45 = arith.constant 0 : index
    %c0_46 = arith.constant 0 : index
    %c0_47 = arith.constant 0 : index
    %149 = vector.load %arg3[%c0_45, %c0_46, %c0_47] : memref<1x8x128xf32, #tpu.memory_space<vmem>>, vector<1x8x128xf32>
    %150 = vector.shape_cast %149 : vector<1x8x128xf32> to vector<8x128xf32>
    %151 = vector.shape_cast %148 : vector<8x128xf32> to vector<1x8x128xf32>
    tpu.vector_store %arg3[%c0_45, %c0_46, %c0_47], %151 {strides = array<i32>} : memref<1x8x128xf32, #tpu.memory_space<vmem>>, vector<1x8x128xf32>,
    return
  }
  func.func @transform_0(%arg0: i32) -> (i32, i32, i32) {
    %c0_i32 = arith.constant 0 : i32
    %c0_i32_0 = arith.constant 0 : i32
    %c0_i32_1 = arith.constant 0 : i32
    return %c0_i32, %arg0, %c0_i32_0 : i32, i32, i32
  }
  func.func @transform_1(%arg0: i32) -> (i32, i32, i32) {
    %c0_i32 = arith.constant 0 : i32
    %c0_i32_0 = arith.constant 0 : i32
    %c0_i32_1 = arith.constant 0 : i32
    return %c0_i32, %arg0, %c0_i32_0 : i32, i32, i32
  }
  func.func @transform_2(%arg0: i32) -> (i32, i32, i32) {
    %c0_i32 = arith.constant 0 : i32
    %c0_i32_0 = arith.constant 0 : i32
    %c0_i32_1 = arith.constant 0 : i32
    return %arg0, %c0_i32, %c0_i32_0 : i32, i32, i32
  }
}

</mosaic_0001>

<llo_original>
// kernel: tpu_custom_call.1
$region0: #{tpu_custom_call.1}
  #allocation0 [shape = 'u32[]', space=smem, size = 0x4, offset = 0x4, fixed_abs, tag = 'smem constant byte address 0x4 - core index']
  #allocation1 [shape = 'u32[72,128]{1,0:T(1,128)}', space=vmem, size = 0x9000, scoped, tag = 'internal scratch']
  %s0 = inlined_call_operand.hbm [shape: f32[4,16,128], index: 0, kind: input, shape index: {}]
  %s1 = inlined_call_operand.hbm [shape: f32[4,16,128], index: 1, kind: input, shape index: {}]
  %s2 = inlined_call_operand.hbm [shape: f32[1,8,128], index: 2, kind: output, shape index: {}]
  %s3 = sld [smem:[#allocation0]]
  $region26: #{tpu_custom_call.1} parent=0
    _
  %s5 = ssub.s32 1, %s3
  %s6 = scalar_select 0, %s5, %s3
  $region1: #{tpu_custom_call.1} parent=0
    #allocation2 [shape = 'u8[32768]{0}', space=vmem, size = 0x8000, scoped, tag = 'input window, operand 0, single buffered']
    #allocation3 [shape = 's32[1]{0}', space=sflag, size = 0x4, scoped, tag = 'scoped memory for tpu_custom_call.1']
    #allocation4 [shape = 's32[1]{0}', space=sflag, size = 0x4, scoped, tag = 'scoped memory for tpu_custom_call.1']
    #allocation5 [shape = 'u8[32768]{0}', space=vmem, size = 0x8000, scoped, tag = 'input window, operand 1, single buffered']
    #allocation6 [shape = 's32[1]{0}', space=sflag, size = 0x4, scoped, tag = 'scoped memory for tpu_custom_call.1']
    #allocation7 [shape = 'u8[4096]{0}', space=vmem, size = 0x1000, scoped, tag = 'output window, operand 0, single buffered']
    %7 = vsyncpa [#allocation3], 0
    %8 = vsyncpa [#allocation6], 0
    %9 = vsyncpa [#allocation4], 0
    // Predicated region
    $region2: #{tpu_custom_call.1} parent=1 // pred_check
      _
    $region3: #{tpu_custom_call.1} parent=1 // pred_check_branch
      %11 = sbr.rel (0) target = $region5
    $region4: #{tpu_custom_call.1} parent=1 // pred_region
      %13 = vsyncadd [#allocation3], 0
      %s14 = sshll.u32 %s0, 4
      %s15 = int_to_ptr.hbm [resolvable:$true] %s14
      %s16 = sshll.u32 [#allocation2], 4
      %s17 = int_to_ptr.vmem [resolvable:$true] %s16
      %22 = dma.hbm_to_vmem [thread:$0]  %s15, 1024, %s17, [#allocation3], 128, 128, 8
    $region5: #{tpu_custom_call.1} parent=1 // pred_fallthru
      _
    // Predicated region
    $region6: #{tpu_custom_call.1} parent=1 // pred_check
      _
    $region7: #{tpu_custom_call.1} parent=1 // pred_check_branch
      %24 = sbr.rel (0) target = $region9
    $region8: #{tpu_custom_call.1} parent=1 // pred_region
      %26 = vsyncadd [#allocation6], 0
      %s27 = sshll.u32 %s1, 4
      %s28 = int_to_ptr.hbm [resolvable:$true] %s27
      %s29 = sshll.u32 [#allocation5], 4
      %s30 = int_to_ptr.vmem [resolvable:$true] %s29
      %35 = dma.hbm_to_vmem [thread:$0]  %s28, 1024, %s30, [#allocation6], 128, 128, 8
    $region9: #{tpu_custom_call.1} parent=1 // pred_fallthru
      _
    // Predicated region
    $region10: #{tpu_custom_call.1} parent=1 // pred_check
      _
    $region11: #{tpu_custom_call.1} parent=1 // pred_check_branch
      %37 = sbr.rel (0) target = $region13
    $region12: #{tpu_custom_call.1} parent=1 // pred_region
      %39 = dma.done [#allocation3], 1024
    $region13: #{tpu_custom_call.1} parent=1 // pred_fallthru
      _
    // Predicated region
    $region14: #{tpu_custom_call.1} parent=1 // pred_check
      _
    $region15: #{tpu_custom_call.1} parent=1 // pred_check_branch
      %41 = sbr.rel (0) target = $region17
    $region16: #{tpu_custom_call.1} parent=1 // pred_region
      %43 = dma.done [#allocation6], 1024
    $region17: #{tpu_custom_call.1} parent=1 // pred_fallthru
      _
    %v44 = vld [vmem:[#allocation2] sm:$0xff]
    %v45 = vld [vmem:[#allocation2 + $0x8] sm:$0xff]
    %s46 = scalar_lea.vmem [#allocation2], 16
    %v47 = vld [vmem:[%s46] sm:$0xff]
    %v48 = vld [vmem:[%s46 + $0x8] sm:$0xff]
    %s49 = scalar_lea.vmem [#allocation2], 32
    %v50 = vld [vmem:[%s49] sm:$0xff]
    %v51 = vld [vmem:[%s49 + $0x8] sm:$0xff]
    %s52 = scalar_lea.vmem [#allocation2], 48
    %v53 = vld [vmem:[%s52] sm:$0xff]
    %v54 = vld [vmem:[%s52 + $0x8] sm:$0xff]
    %v55 = vld [vmem:[#allocation5] sm:$0xff]
    %v56 = vld [vmem:[#allocation5 + $0x8] sm:$0xff]
    %s57 = scalar_lea.vmem [#allocation5], 16
    %v58 = vld [vmem:[%s57] sm:$0xff]
    %v59 = vld [vmem:[%s57 + $0x8] sm:$0xff]
    %s60 = scalar_lea.vmem [#allocation5], 32
    %v61 = vld [vmem:[%s60] sm:$0xff]
    %v62 = vld [vmem:[%s60 + $0x8] sm:$0xff]
    %s63 = scalar_lea.vmem [#allocation5], 48
    %v64 = vld [vmem:[%s63] sm:$0xff]
    %v65 = vld [vmem:[%s63 + $0x8] sm:$0xff]
    %v66 = vmul.f32 %v50, 0.5
    %v67 = vmul.f32 %v51, 0.5
    %v68 = vmul.f32 %v53, 0.5
    %v69 = vmul.f32 %v54, 0.5
    %v70 = vmul.f32 %v61, 0.5
    %v71 = vmul.f32 %v62, 0.5
    %v72 = vmul.f32 %v64, 0.5
    %v73 = vmul.f32 %v65, 0.5
    %v74 = vsub.f32 %v44, %v66
    %v75 = vsub.f32 %v45, %v67
    %v76 = vadd.f32 %v44, %v66
    %v77 = vadd.f32 %v45, %v67
    %v78 = vsub.f32 %v47, %v68
    %v79 = vsub.f32 %v48, %v69
    %v80 = vadd.f32 %v47, %v68
    %v81 = vadd.f32 %v48, %v69
    %v82 = vsub.f32 %v55, %v70
    %v83 = vsub.f32 %v56, %v71
    %v84 = vadd.f32 %v55, %v70
    %v85 = vadd.f32 %v56, %v71
    %v86 = vsub.f32 %v58, %v72
    %v87 = vsub.f32 %v59, %v73
    %v88 = vadd.f32 %v58, %v72
    %v89 = vadd.f32 %v59, %v73
    %v90 = vmin.f32 %v76, %v84
    %v91 = vmin.f32 %v77, %v85
    %v92 = vmax.f32 %v74, %v82
    %v93 = vmax.f32 %v75, %v83
    %v94 = vsub.f32 %v90, %v92
    %v95 = vsub.f32 %v91, %v93
    %v96 = vmin.f32 %v80, %v88
    %v97 = vmin.f32 %v81, %v89
    %v98 = vmax.f32 %v78, %v86
    %v99 = vmax.f32 %v79, %v87
    %v100 = vsub.f32 %v96, %v98
    %v101 = vsub.f32 %v97, %v99
    %v102 = vmax.f32 %v94, 0.0
    %v103 = vmax.f32 %v95, 0.0
    %v104 = vmax.f32 %v100, 0.0
    %v105 = vmax.f32 %v101, 0.0
    %v106 = vmul.f32 %v102, %v104
    %v107 = vmul.f32 %v103, %v105
    %v108 = vadd.f32 %v53, 1e-10
    %v109 = vadd.f32 %v54, 1e-10
    %v110 = vadd.f32 %v64, 1e-10
    %v111 = vadd.f32 %v65, 1e-10
    %v112 = vmul.f32 %v50, %v108
    %v113 = vmul.f32 %v51, %v109
    %v114 = vmul.f32 %v61, %v110
    %v115 = vmul.f32 %v62, %v111
    %v116 = vadd.f32 %v112, %v114
    %v117 = vadd.f32 %v113, %v115
    %v118 = vsub.f32 %v116, %v106
    %v119 = vsub.f32 %v117, %v107
    %v120 = vadd.f32 %v118, 1e-10
    %v121 = vadd.f32 %v119, 1e-10
    %v122 = vrcp.pop %v120
    %v123 = vrcp.pop %v121
    %v124 = vmul.f32 %v106, %v122
    %v125 = vmul.f32 %v107, %v123
    %v126 = vmax.f32 %v76, %v84
    %v127 = vmax.f32 %v77, %v85
    %v128 = vmin.f32 %v74, %v82
    %v129 = vmin.f32 %v75, %v83
    %v130 = vsub.f32 %v126, %v128
    %v131 = vsub.f32 %v127, %v129
    %v132 = vmax.f32 %v80, %v88
    %v133 = vmax.f32 %v81, %v89
    %v134 = vmin.f32 %v78, %v86
    %v135 = vmin.f32 %v79, %v87
    %v136 = vsub.f32 %v132, %v134
    %v137 = vsub.f32 %v133, %v135
    %v138 = vsub.f32 %v55, %v44
    %v139 = vsub.f32 %v56, %v45
    %v140 = vsub.f32 %v58, %v47
    %v141 = vsub.f32 %v59, %v48
    %v142 = vmul.f32 %v138, %v138
    %v143 = vmul.f32 %v139, %v139
    %v144 = vmul.f32 %v140, %v140
    %v145 = vmul.f32 %v141, %v141
    %v146 = vadd.f32 %v142, %v144
    %v147 = vadd.f32 %v143, %v145
    %v148 = vadd.f32 %v146, 1e-20
    %v149 = vadd.f32 %v147, 1e-20
    %v150 = vrsqrt.pop %v148
    %v151 = vmul.f32 %v150, %v148
    %v152 = vmul.f32 %v151, %v150
    %v153 = vmul.f32 0.5, %v152
    %v154 = vsub.f32 1.5, %v153
    %v155 = vmul.f32 %v150, %v154
    %vm156 = vweird.f32 %v148
    %vm157 = vweird.f32 %v150
    %vm158 = vmor %vm156, %vm157
    %v159 = vsel %vm158, %v150, %v155
    %v160 = vrsqrt.pop %v149
    %v161 = vmul.f32 %v160, %v149
    %v162 = vmul.f32 %v161, %v160
    %v163 = vmul.f32 0.5, %v162
    %v164 = vsub.f32 1.5, %v163
    %v165 = vmul.f32 %v160, %v164
    %vm166 = vweird.f32 %v149
    %vm167 = vweird.f32 %v160
    %vm168 = vmor %vm166, %vm167
    %v169 = vsel %vm168, %v160, %v165
    %v170 = vand.u32 2147483647, %v138
    %v171 = vand.u32 2147483647, %v139
    %v172 = vmul.f32 %v170, %v159
    %v173 = vmul.f32 %v171, %v169
    %v174 = vand.u32 2147483647, %v140
    %v175 = vand.u32 2147483647, %v141
    %v176 = vmul.f32 %v174, %v159
    %v177 = vmul.f32 %v175, %v169
    %vm178 = vcmp.gt.f32.partialorder %v172, 0.70710677
    %vm179 = vcmp.gt.f32.partialorder %v173, 0.70710677
    %v180 = vsel %vm178, %v176, %v172
    %v181 = vsel %vm179, %v177, %v173
    %v182 = vmul.f32 %v180, 2.0
    %v183 = vmul.f32 %v181, 2.0
    %v184 = vmul.f32 %v180, %v180
    %v185 = vmul.f32 %v181, %v181
    %v186 = vsub.f32 1.0, %v184
    %v187 = vsub.f32 1.0, %v185
    %v188 = vmax.f32 %v186, 0.0
    %v189 = vmax.f32 %v187, 0.0
    %v190 = vrsqrt.pop %v188
    %v191 = vmul.f32 %v190, %v188
    %v192 = vmul.f32 %v191, %v190
    %v193 = vmul.f32 0.5, %v192
    %v194 = vsub.f32 1.5, %v193
    %v195 = vmul.f32 %v190, %v194
    %v196 = vmul.f32 %v188, %v195
    %vm197 = vcmp.eq.f32.partialorder %v188, inf
    %v198 = vsel %vm197, %v188, %v196
    %vm199 = vcmp.eq.f32.partialorder %v188, 0.0
    %v200 = vand.u32 %v188, 2147483648
    %v201 = vsel %vm199, %v200, %v198
    %v202 = vrsqrt.pop %v189
    %v203 = vmul.f32 %v202, %v189
    %v204 = vmul.f32 %v203, %v202
    %v205 = vmul.f32 0.5, %v204
    %v206 = vsub.f32 1.5, %v205
    %v207 = vmul.f32 %v202, %v206
    %v208 = vmul.f32 %v189, %v207
    %vm209 = vcmp.eq.f32.partialorder %v189, inf
    %v210 = vsel %vm209, %v189, %v208
    %vm211 = vcmp.eq.f32.partialorder %v189, 0.0
    %v212 = vand.u32 %v189, 2147483648
    %v213 = vsel %vm211, %v212, %v210
    %v214 = vmul.f32 %v182, %v201
    %v215 = vmul.f32 %v183, %v213
    %v216 = vsub.f32 %v214, 2.0
    %v217 = vsub.f32 %v215, 2.0
    %v218 = vadd.f32 %v130, 1e-10
    %v219 = vadd.f32 %v131, 1e-10
    %v220 = vrcp.pop %v218
    %v221 = vrcp.pop %v219
    %v222 = vmul.f32 %v138, %v220
    %v223 = vmul.f32 %v139, %v221
    %v224 = vmul.f32 %v222, %v222
    %v225 = vmul.f32 %v223, %v223
    %v226 = vadd.f32 %v136, 1e-10
    %v227 = vadd.f32 %v137, 1e-10
    %v228 = vrcp.pop %v226
    %v229 = vrcp.pop %v227
    %v230 = vmul.f32 %v140, %v228
    %v231 = vmul.f32 %v141, %v229
    %v232 = vmul.f32 %v230, %v230
    %v233 = vmul.f32 %v231, %v231
    %v234 = vmul.f32 %v216, %v224
    %v235 = vmul.f32 %v217, %v225
    %v236 = vmul.f32 %v234, 1.442695
    %v237 = vpow.pop %v236
    %v238 = vmul.f32 %v235, 1.442695
    %v239 = vpow.pop %v238
    %v240 = vsub.f32 2.0, %v237
    %v241 = vsub.f32 2.0, %v239
    %v242 = vmul.f32 %v216, %v232
    %v243 = vmul.f32 %v217, %v233
    %v244 = vmul.f32 %v242, 1.442695
    %v245 = vpow.pop %v244
    %v246 = vmul.f32 %v243, 1.442695
    %v247 = vpow.pop %v246
    %v248 = vsub.f32 %v240, %v245
    %v249 = vsub.f32 %v241, %v247
    %v250 = vsub.f32 %v50, %v61
    %v251 = vsub.f32 %v51, %v62
    %v252 = vand.u32 2147483647, %v250
    %v253 = vand.u32 2147483647, %v251
    %v254 = vmax.f32 %v50, %v61
    %v255 = vmax.f32 %v51, %v62
    %v256 = vrcp.pop %v254
    %v257 = vrcp.pop %v255
    %v258 = vmul.f32 %v252, %v256
    %v259 = vmul.f32 %v253, %v257
    %v260 = vsub.f32 %v108, %v110
    %v261 = vsub.f32 %v109, %v111
    %v262 = vand.u32 2147483647, %v260
    %v263 = vand.u32 2147483647, %v261
    %v264 = vmax.f32 %v108, %v110
    %v265 = vmax.f32 %v109, %v111
    %v266 = vrcp.pop %v264
    %v267 = vrcp.pop %v265
    %v268 = vmul.f32 %v262, %v266
    %v269 = vmul.f32 %v263, %v267
    %v270 = vsub.f32 0.0, %v258
    %v271 = vsub.f32 0.0, %v259
    %v272 = vmul.f32 %v270, 1.442695
    %v273 = vpow.pop %v272
    %v274 = vmul.f32 %v271, 1.442695
    %v275 = vpow.pop %v274
    %v276 = vsub.f32 1.0, %v273
    %v277 = vsub.f32 1.0, %v275
    %v278 = vsub.f32 0.0, %v268
    %v279 = vsub.f32 0.0, %v269
    %v280 = vmul.f32 %v278, 1.442695
    %v281 = vpow.pop %v280
    %v282 = vmul.f32 %v279, 1.442695
    %v283 = vpow.pop %v282
    %v284 = vsub.f32 1.0, %v281
    %v285 = vsub.f32 1.0, %v283
    %v286 = vmul.f32 %v276, %v276
    %v287 = vmul.f32 %v277, %v277
    %v288 = vmul.f32 %v286, %v286
    %v289 = vmul.f32 %v287, %v287
    %v290 = vmul.f32 %v284, %v284
    %v291 = vmul.f32 %v285, %v285
    %v292 = vmul.f32 %v290, %v290
    %v293 = vmul.f32 %v291, %v291
    %v294 = vadd.f32 %v288, %v292
    %v295 = vadd.f32 %v289, %v293
    %v296 = vadd.f32 %v248, %v294
    %v297 = vadd.f32 %v249, %v295
    %v298 = vmul.f32 %v296, 0.5
    %v299 = vmul.f32 %v297, 0.5
    %v300 = vsub.f32 %v124, %v298
    %v301 = vsub.f32 %v125, %v299
    %v302 = vadd.f32 %v300, 1e-10
    %v303 = vadd.f32 %v301, 1e-10
    %s304 = smul.u32 0, 2048
    %v305 = vlaneseq
    %v306 = vshrl.u32 %v305, 7
    %v307 = vadd.s32 %v306, 8
    %v308 = vmul.u32 %v306, 128
    %v309 = vmul.u32 %v307, 128
    %v310 = vstv %s304
    %v311 = vadd.s32 %v310, %v308
    %v312 = vadd.s32 %v310, %v309
    %v313 = vlaneseq
    %v314 = vand.u32 %v313, 127
    %v315 = vadd.s32 %v311, %v314
    %v316 = vadd.s32 %v312, %v314
    %vm317 = vcmp.lt.s32.totalorder %v315, 2000
    %vm318 = vcmp.lt.s32.totalorder %v316, 2000
    %v319 = vsel %vm317, %v302, 0.0
    %v320 = vsel %vm318, %v303, 0.0
    %v321 = vadd.f32 %v319, %v320
    %322 = vst [vmem:[#allocation7] sm:$0xff] %v321
    // Predicated region
    $region18: #{tpu_custom_call.1} parent=1 // pred_check
      _
    $region19: #{tpu_custom_call.1} parent=1 // pred_check_branch
      %324 = sbr.rel (0) target = $region21
    $region20: #{tpu_custom_call.1} parent=1 // pred_region
      %326 = vsyncadd [#allocation4], 0
      %s328 = sshll.u32 [#allocation7], 4
      %s329 = int_to_ptr.vmem [resolvable:$true] %s328
      %s330 = sshll.u32 %s2, 4
      %s331 = int_to_ptr.hbm [resolvable:$true] %s330
      %333 = dma.vmem_to_hbm [thread:$0]  %s329, 128, %s331, [#allocation4]
    $region21: #{tpu_custom_call.1} parent=1 // pred_fallthru
      _
    // Predicated region
    $region22: #{tpu_custom_call.1} parent=1 // pred_check
      _
    $region23: #{tpu_custom_call.1} parent=1 // pred_check_branch
      %335 = sbr.rel (0) target = $region25
    $region24: #{tpu_custom_call.1} parent=1 // pred_region
      %337 = dma.done [#allocation4], 128
    $region25: #{tpu_custom_call.1} parent=1 // pred_fallthru
      _
    %338 = vsyncpa [#allocation3], 1
    %339 = vsyncpa [#allocation6], 1
    %340 = vsyncpa [#allocation4], 1

</llo_original>
